<compile_context>
chip_gen: v7x
topology: tpu7x:2x2x1
jax: 0.10.0
libtpu: 0.0.40
codegen_flags: <defaults>
</compile_context>

<pallas_src>
import functools

import jax
import jax.numpy as jnp
from jax.experimental import pallas as pl
from jax.experimental.pallas import tpu as pltpu


def _round_up(x, m):
    return ((x + m - 1) // m) * m


def _softmax_last(logits):
    m = jnp.max(logits, axis=-1, keepdims=True)
    e = jnp.exp(logits - m)
    denom = jnp.sum(e, axis=-1, keepdims=True)
    return e * pl.reciprocal(denom, approx=True)


def hierarchical_moe_kernel(x_ref, tw_ref, tb_ref, bw_ref, bb_ref, out_ref, *,
                            n_top, n_bot, hp):
    """One batch tile.

    x_ref : (TB, Dp)                bf16 (or f32) activations
    tw_ref: (Dp, n_top*hp + 128)    packed [experts | gate] top weights
    tb_ref: (1,  n_top*hp + 128)    packed top biases (f32)
    bw_ref: (hp, n_bot*hp + 128)    packed [experts | gate] bottom weights
    bb_ref: (1,  n_bot*hp + 128)    packed bottom biases (f32)
    out_ref:(TB, hp)                f32 output
    """
    x = x_ref[...]

    # ---- top level: single wide matmul (experts + gate fused) ----
    y_top = jnp.dot(x, tw_ref[...], preferred_element_type=jnp.float32)
    y_top = y_top + tb_ref[...]
    gate_t = _softmax_last(y_top[:, n_top * hp: n_top * hp + n_top])   # (TB, E_top)

    top_out = y_top[:, 0:hp] * gate_t[:, 0:1]
    for e in range(1, n_top):                      # tiny static unroll (VPU only)
        top_out = top_out + y_top[:, e * hp:(e + 1) * hp] * gate_t[:, e:e + 1]

    # ---- bottom level: same structure on top_out ----
    y_bot = jnp.dot(top_out.astype(bw_ref.dtype), bw_ref[...],
                    preferred_element_type=jnp.float32)
    y_bot = y_bot + bb_ref[...]
    gate_b = _softmax_last(y_bot[:, n_bot * hp: n_bot * hp + n_bot])   # (TB, E_bot)

    bot_out = y_bot[:, 0:hp] * gate_b[:, 0:1]
    for e in range(1, n_bot):
        bot_out = bot_out + y_bot[:, e * hp:(e + 1) * hp] * gate_b[:, e:e + 1]

    out_ref[...] = bot_out.astype(out_ref.dtype)


# --------------------------------------------------------------------------
# Host-side packing (free relative to the kernel, done once).
# --------------------------------------------------------------------------
def _pack_level(expert_w, expert_b, gate_w, gate_b, d_in_p, h_p, compute_dtype):
    e, d_in, h = expert_w.shape
    gp = _round_up(e, 128)   # pad the gate block to a full lane tile

    wp = jnp.zeros((e, d_in_p, h_p), jnp.float32)
    wp = wp.at[:, :d_in, :h].set(expert_w.astype(jnp.float32))
    w_flat = jnp.transpose(wp, (1, 0, 2)).reshape(d_in_p, e * h_p)
    gw = jnp.zeros((d_in_p, gp), jnp.float32).at[:d_in, :e].set(gate_w)
    w_comb = jnp.concatenate([w_flat, gw], axis=1).astype(compute_dtype)

    bexp = jnp.zeros((e, h_p), jnp.float32).at[:, :h].set(expert_b.reshape(e, h))
    gb = jnp.zeros((gp,), jnp.float32).at[:e].set(gate_b.reshape(e))
    b_comb = jnp.concatenate([bexp.reshape(e * h_p), gb]).reshape(1, e * h_p + gp)
    return w_comb, b_comb


def pack_params(params, compute_dtype=jnp.bfloat16):
    e_top, d_in, h = params["top_w"].shape
    e_bot = params["bot_w"].shape[0]
    dp = _round_up(d_in, 128)
    hp = _round_up(h, 128)

    tw, tb = _pack_level(params["top_w"], params["top_b"],
                         params["top_gate_w"], params["top_gate_b"],
                         dp, hp, compute_dtype)
    bw, bb = _pack_level(params["bot_w"], params["bot_b"],
                         params["bot_gate_w"], params["bot_gate_b"],
                         hp, hp, compute_dtype)

    packed = {"top_w": tw, "top_b": tb, "bot_w": bw, "bot_b": bb}
    meta = {"d_in": d_in, "dp": dp, "h": h, "hp": hp,
            "n_top": e_top, "n_bot": e_bot}
    return packed, meta


def hierarchical_moe(x, packed, meta, *, tile_b=256):
    b, d_in = x.shape
    dp, hp = meta["dp"], meta["hp"]
    n_top, n_bot = meta["n_top"], meta["n_bot"]
    compute_dtype = packed["top_w"].dtype

    # Batch tile: multiple of 16 (bf16 sublane packing), capped at tile_b.
    tb_rows = min(tile_b, _round_up(b, 16))
    bp = _round_up(b, tb_rows)
    xp = jnp.zeros((bp, dp), compute_dtype).at[:b, :d_in].set(
        x.astype(compute_dtype))

    kernel = functools.partial(hierarchical_moe_kernel,
                               n_top=n_top, n_bot=n_bot, hp=hp)

    itemsize = jnp.dtype(compute_dtype).itemsize
    weight_bytes = sum(int(v.size) * v.dtype.itemsize for v in packed.values())
    act_bytes = tb_rows * dp * itemsize + tb_rows * hp * 4
    # Conservative budget (weights + double-buffered activation tiles),
    # clamped so it is valid on v7x's 64 MiB VMEM as well as v5e/v6e.
    vmem_limit = int(min(max(2 * weight_bytes + 2 * act_bytes + (4 << 20),
                             32 << 20), 48 << 20))

    w_top_cols = packed["top_w"].shape[1]
    w_bot_cols = packed["bot_w"].shape[1]
    cost = pl.CostEstimate(
        flops=2 * bp * (dp * w_top_cols + hp * w_bot_cols),
        transcendentals=bp * (n_top + n_bot),
        bytes_accessed=int(bp * dp * itemsize + weight_bytes + bp * hp * 4),
    )

    out = pl.pallas_call(
        kernel,
        out_shape=jax.ShapeDtypeStruct((bp, hp), jnp.float32),
        grid=(bp // tb_rows,),
        in_specs=[
            pl.BlockSpec((tb_rows, dp), lambda i: (i, 0)),          # x: tiled
            pl.BlockSpec(packed["top_w"].shape, lambda i: (0, 0)),  # weights resident
            pl.BlockSpec(packed["top_b"].shape, lambda i: (0, 0)),
            pl.BlockSpec(packed["bot_w"].shape, lambda i: (0, 0)),
            pl.BlockSpec(packed["bot_b"].shape, lambda i: (0, 0)),
        ],
        out_specs=pl.BlockSpec((tb_rows, hp), lambda i: (i, 0)),
        compiler_params=pltpu.CompilerParams(
            dimension_semantics=("parallel",),
            vmem_limit_bytes=vmem_limit),
        cost_estimate=cost,
    )(xp, packed["top_w"], packed["top_b"], packed["bot_w"], packed["bot_b"])

    return out[:b, :meta["h"]]


# --------------------------------------------------------------------------
# Parameter init (natural PyTorch-like layout, weights stored as weight.T)
# and a pure-JAX f32 reference for correctness checking.
# --------------------------------------------------------------------------
def init_params(key, input_dim, hidden_dim, num_top, num_bottom):
    ks = jax.random.split(key, 8)
    scale = 0.1
    return {
        "top_gate_w": scale * jax.random.normal(ks[0], (input_dim, num_top), jnp.float32),
        "top_gate_b": scale * jax.random.normal(ks[1], (1, num_top), jnp.float32),
        "top_w":      scale * jax.random.normal(ks[2], (num_top, input_dim, hidden_dim), jnp.float32),
        "top_b":      scale * jax.random.normal(ks[3], (num_top, 1, hidden_dim), jnp.float32),
        "bot_gate_w": scale * jax.random.normal(ks[4], (hidden_dim, num_bottom), jnp.float32),
        "bot_gate_b": scale * jax.random.normal(ks[5], (1, num_bottom), jnp.float32),
        "bot_w":      scale * jax.random.normal(ks[6], (num_bottom, hidden_dim, hidden_dim), jnp.float32),
        "bot_b":      scale * jax.random.normal(ks[7], (num_bottom, 1, hidden_dim), jnp.float32),
    }


def reference(x, p):
    top_logits = x @ p["top_gate_w"] + p["top_gate_b"]
    top_w = jax.nn.softmax(top_logits, axis=-1)
    top_outs = jnp.einsum("bi,eih->bhe", x, p["top_w"]) + jnp.transpose(p["top_b"], (1, 2, 0))
    top_out = jnp.sum(top_outs * top_w[:, None, :], axis=-1)
    bot_logits = top_out @ p["bot_gate_w"] + p["bot_gate_b"]
    bot_w = jax.nn.softmax(bot_logits, axis=-1)
    bot_outs = jnp.einsum("bh,ehk->bke", top_out, p["bot_w"]) + jnp.transpose(p["bot_b"], (1, 2, 0))
    return jnp.sum(bot_outs * bot_w[:, None, :], axis=-1)


if __name__ == "__main__":
    B, input_dim, hidden_dim = 8, 32, 32
    num_top, num_bottom = 2, 3

    key = jax.random.PRNGKey(0)
    kx, kp = jax.random.split(key)
    x = jax.random.normal(kx, (B, input_dim), jnp.float32)
    params = init_params(kp, input_dim, hidden_dim, num_top, num_bottom)

    packed, meta = pack_params(params, compute_dtype=jnp.bfloat16)
    out = hierarchical_moe(x, packed, meta)
    out = jax.block_until_ready(out)

    ref = reference(x, params)
    assert out.shape == (B, hidden_dim)
    # bf16 MXU inputs with f32 accumulation -> loosened tolerance vs f32 reference.
    assert jnp.allclose(out, ref, atol=2e-2, rtol=2e-2), "mismatch vs reference"
    print("KERNEL_OK")
</pallas_src>

<mosaic_0001>
module attributes {stable_mosaic.version = 11 : i64} {
  func.func @hierarchical_moe_kernel(%arg0: i32, %arg1: memref<16x128xbf16, #tpu.memory_space<vmem>>, %arg2: memref<128x384xbf16, #tpu.memory_space<vmem>>, %arg3: memref<1x384xf32, #tpu.memory_space<vmem>>, %arg4: memref<128x512xbf16, #tpu.memory_space<vmem>>, %arg5: memref<1x512xf32, #tpu.memory_space<vmem>>, %arg6: memref<16x128xf32, #tpu.memory_space<vmem>>) attributes {dimension_semantics = [#tpu.dimension_semantics<parallel>], iteration_bounds = array<i64: 1>, scalar_prefetch = 0 : i64, scratch_operands = 0 : i64, tpu.core_type = #tpu.core_type<tc>, window_params = [{transform_indices = @transform_0, window_bounds = array<i64: 16, 128>}, {pipeline_mode = #tpu.pipeline_mode<synchronous>, transform_indices = @transform_1, window_bounds = array<i64: 128, 384>}, {pipeline_mode = #tpu.pipeline_mode<synchronous>, transform_indices = @transform_2, window_bounds = array<i64: 1, 384>}, {pipeline_mode = #tpu.pipeline_mode<synchronous>, transform_indices = @transform_3, window_bounds = array<i64: 128, 512>}, {pipeline_mode = #tpu.pipeline_mode<synchronous>, transform_indices = @transform_4, window_bounds = array<i64: 1, 512>}, {transform_indices = @transform_5, window_bounds = array<i64: 16, 128>}]} {
    %c0 = arith.constant 0 : index
    %c0_0 = arith.constant 0 : index
    %0 = vector.load %arg1[%c0, %c0_0] : memref<16x128xbf16, #tpu.memory_space<vmem>>, vector<16x128xbf16>
    %c0_1 = arith.constant 0 : index
    %c0_2 = arith.constant 0 : index
    %1 = vector.load %arg2[%c0_1, %c0_2] : memref<128x384xbf16, #tpu.memory_space<vmem>>, vector<128x384xbf16>
    %cst = arith.constant dense<0.000000e+00> : vector<16x384xf32>
    %2 = tpu.matmul %0, %1, %cst {dimension_numbers = #tpu.dot_dimension_numbers<[1], [0], [0], [1], [0, 0, 1, 1], [], []>} : vector<16x128xbf16>, vector<128x384xbf16>, vector<16x384xf32> -> vector<16x384xf32>
    %c0_3 = arith.constant 0 : index
    %c0_4 = arith.constant 0 : index
    %3 = vector.load %arg3[%c0_3, %c0_4] : memref<1x384xf32, #tpu.memory_space<vmem>>, vector<1x384xf32>
    %4 = vector.broadcast %3 : vector<1x384xf32> to vector<16x384xf32>
    %5 = arith.addf %2, %4 : vector<16x384xf32>
    %6 = vector.extract_strided_slice %5 {offsets = [0, 256], sizes = [16, 2], strides = [1, 1]} : vector<16x384xf32> to vector<16x2xf32>
    %cst_5 = arith.constant dense<0xFF800000> : vector<16xf32>
    %7 = vector.multi_reduction <maximumf>, %6, %cst_5 [1] : vector<16x2xf32> to vector<16xf32>
    %8 = vector.shape_cast %7 : vector<16xf32> to vector<16x1xf32>
    %9 = vector.broadcast %8 : vector<16x1xf32> to vector<16x2xf32>
    %10 = arith.subf %6, %9 : vector<16x2xf32>
    %11 = math.exp %10 : vector<16x2xf32>
    %cst_6 = arith.constant dense<0.000000e+00> : vector<16xf32>
    %12 = vector.multi_reduction <add>, %11, %cst_6 [1] : vector<16x2xf32> to vector<16xf32>
    %13 = vector.shape_cast %12 : vector<16xf32> to vector<16x1xf32>
    %14 = tpu.reciprocal %13 {approx = true} : vector<16x1xf32> -> vector<16x1xf32>
    %15 = vector.broadcast %14 : vector<16x1xf32> to vector<16x2xf32>
    %16 = arith.mulf %11, %15 : vector<16x2xf32>
    %17 = vector.extract_strided_slice %5 {offsets = [0, 0], sizes = [16, 128], strides = [1, 1]} : vector<16x384xf32> to vector<16x128xf32>
    %18 = vector.extract_strided_slice %16 {offsets = [0, 0], sizes = [16, 1], strides = [1, 1]} : vector<16x2xf32> to vector<16x1xf32>
    %19 = vector.broadcast %18 : vector<16x1xf32> to vector<16x128xf32>
    %20 = arith.mulf %17, %19 : vector<16x128xf32>
    %21 = vector.extract_strided_slice %5 {offsets = [0, 128], sizes = [16, 128], strides = [1, 1]} : vector<16x384xf32> to vector<16x128xf32>
    %22 = vector.extract_strided_slice %16 {offsets = [0, 1], sizes = [16, 1], strides = [1, 1]} : vector<16x2xf32> to vector<16x1xf32>
    %23 = vector.broadcast %22 : vector<16x1xf32> to vector<16x128xf32>
    %24 = arith.mulf %21, %23 : vector<16x128xf32>
    %25 = arith.addf %20, %24 : vector<16x128xf32>
    %26 = arith.truncf %25 : vector<16x128xf32> to vector<16x128xbf16>
    %c0_7 = arith.constant 0 : index
    %c0_8 = arith.constant 0 : index
    %27 = vector.load %arg4[%c0_7, %c0_8] : memref<128x512xbf16, #tpu.memory_space<vmem>>, vector<128x512xbf16>
    %cst_9 = arith.constant dense<0.000000e+00> : vector<16x512xf32>
    %28 = tpu.matmul %26, %27, %cst_9 {dimension_numbers = #tpu.dot_dimension_numbers<[1], [0], [0], [1], [0, 0, 1, 1], [], []>} : vector<16x128xbf16>, vector<128x512xbf16>, vector<16x512xf32> -> vector<16x512xf32>
    %c0_10 = arith.constant 0 : index
    %c0_11 = arith.constant 0 : index
    %29 = vector.load %arg5[%c0_10, %c0_11] : memref<1x512xf32, #tpu.memory_space<vmem>>, vector<1x512xf32>
    %30 = vector.broadcast %29 : vector<1x512xf32> to vector<16x512xf32>
    %31 = arith.addf %28, %30 : vector<16x512xf32>
    %32 = vector.extract_strided_slice %31 {offsets = [0, 384], sizes = [16, 3], strides = [1, 1]} : vector<16x512xf32> to vector<16x3xf32>
    %cst_12 = arith.constant dense<0xFF800000> : vector<16xf32>
    %33 = vector.multi_reduction <maximumf>, %32, %cst_12 [1] : vector<16x3xf32> to vector<16xf32>
    %34 = vector.shape_cast %33 : vector<16xf32> to vector<16x1xf32>
    %35 = vector.broadcast %34 : vector<16x1xf32> to vector<16x3xf32>
    %36 = arith.subf %32, %35 : vector<16x3xf32>
    %37 = math.exp %36 : vector<16x3xf32>
    %cst_13 = arith.constant dense<0.000000e+00> : vector<16xf32>
    %38 = vector.multi_reduction <add>, %37, %cst_13 [1] : vector<16x3xf32> to vector<16xf32>
    %39 = vector.shape_cast %38 : vector<16xf32> to vector<16x1xf32>
    %40 = tpu.reciprocal %39 {approx = true} : vector<16x1xf32> -> vector<16x1xf32>
    %41 = vector.broadcast %40 : vector<16x1xf32> to vector<16x3xf32>
    %42 = arith.mulf %37, %41 : vector<16x3xf32>
    %43 = vector.extract_strided_slice %31 {offsets = [0, 0], sizes = [16, 128], strides = [1, 1]} : vector<16x512xf32> to vector<16x128xf32>
    %44 = vector.extract_strided_slice %42 {offsets = [0, 0], sizes = [16, 1], strides = [1, 1]} : vector<16x3xf32> to vector<16x1xf32>
    %45 = vector.broadcast %44 : vector<16x1xf32> to vector<16x128xf32>
    %46 = arith.mulf %43, %45 : vector<16x128xf32>
    %47 = vector.extract_strided_slice %31 {offsets = [0, 128], sizes = [16, 128], strides = [1, 1]} : vector<16x512xf32> to vector<16x128xf32>
    %48 = vector.extract_strided_slice %42 {offsets = [0, 1], sizes = [16, 1], strides = [1, 1]} : vector<16x3xf32> to vector<16x1xf32>
    %49 = vector.broadcast %48 : vector<16x1xf32> to vector<16x128xf32>
    %50 = arith.mulf %47, %49 : vector<16x128xf32>
    %51 = arith.addf %46, %50 : vector<16x128xf32>
    %52 = vector.extract_strided_slice %31 {offsets = [0, 256], sizes = [16, 128], strides = [1, 1]} : vector<16x512xf32> to vector<16x128xf32>
    %53 = vector.extract_strided_slice %42 {offsets = [0, 2], sizes = [16, 1], strides = [1, 1]} : vector<16x3xf32> to vector<16x1xf32>
    %54 = vector.broadcast %53 : vector<16x1xf32> to vector<16x128xf32>
    %55 = arith.mulf %52, %54 : vector<16x128xf32>
    %56 = arith.addf %51, %55 : vector<16x128xf32>
    %c0_14 = arith.constant 0 : index
    %c0_15 = arith.constant 0 : index
    %57 = vector.load %arg6[%c0_14, %c0_15] : memref<16x128xf32, #tpu.memory_space<vmem>>, vector<16x128xf32>
    tpu.vector_store %arg6[%c0_14, %c0_15], %56 {strides = array<i32>} : memref<16x128xf32, #tpu.memory_space<vmem>>, vector<16x128xf32>,
    return
  }
  func.func @transform_0(%arg0: i32) -> (i32, i32) {
    %c0_i32 = arith.constant 0 : i32
    %c0_i32_0 = arith.constant 0 : i32
    return %arg0, %c0_i32 : i32, i32
  }
  func.func @transform_1(%arg0: i32) -> (i32, i32) {
    %c0_i32 = arith.constant 0 : i32
    %c0_i32_0 = arith.constant 0 : i32
    %c0_i32_1 = arith.constant 0 : i32
    return %c0_i32, %c0_i32_0 : i32, i32
  }
  func.func @transform_2(%arg0: i32) -> (i32, i32) {
    %c0_i32 = arith.constant 0 : i32
    %c0_i32_0 = arith.constant 0 : i32
    %c0_i32_1 = arith.constant 0 : i32
    return %c0_i32, %c0_i32_0 : i32, i32
  }
  func.func @transform_3(%arg0: i32) -> (i32, i32) {
    %c0_i32 = arith.constant 0 : i32
    %c0_i32_0 = arith.constant 0 : i32
    %c0_i32_1 = arith.constant 0 : i32
    return %c0_i32, %c0_i32_0 : i32, i32
  }
  func.func @transform_4(%arg0: i32) -> (i32, i32) {
    %c0_i32 = arith.constant 0 : i32
    %c0_i32_0 = arith.constant 0 : i32
    %c0_i32_1 = arith.constant 0 : i32
    return %c0_i32, %c0_i32_0 : i32, i32
  }
  func.func @transform_5(%arg0: i32) -> (i32, i32) {
    %c0_i32 = arith.constant 0 : i32
    %c0_i32_0 = arith.constant 0 : i32
    return %arg0, %c0_i32 : i32, i32
  }
}

</mosaic_0001>

<llo_original>
// kernel: tpu_custom_call.1
$region0: #{tpu_custom_call.1}
  #allocation0 [shape = 'u32[]', space=smem, size = 0x4, offset = 0x4, fixed_abs, tag = 'smem constant byte address 0x4 - core index']
  #allocation1 [shape = 'u32[144,128]{1,0:T(1,128)}', space=vmem, size = 0x12000, scoped, tag = 'internal scratch']
  %s0 = inlined_call_operand.hbm [shape: bf16[16,128], index: 0, kind: input, shape index: {}]
  %s1 = inlined_call_operand.hbm [shape: bf16[128,384], index: 1, kind: input, shape index: {}]
  %s2 = inlined_call_operand.vmem [shape: f32[1,384], index: 2, kind: input, shape index: {}]
  %s3 = inlined_call_operand.hbm [shape: bf16[128,512], index: 3, kind: input, shape index: {}]
  %s4 = inlined_call_operand.vmem [shape: f32[1,512], index: 4, kind: input, shape index: {}]
  %s5 = inlined_call_operand.hbm [shape: f32[16,128], index: 5, kind: output, shape index: {}]
  %s6 = sld [smem:[#allocation0]]
  $region42: #{tpu_custom_call.1} parent=0
    _
  %s8 = ssub.s32 1, %s6
  %s9 = scalar_select 0, %s8, %s6
  $region1: #{tpu_custom_call.1} parent=0
    #allocation2 [shape = 'u8[4096]{0}', space=vmem, size = 0x1000, scoped, tag = 'input window, operand 0, single buffered']
    #allocation3 [shape = 's32[1]{0}', space=sflag, size = 0x4, scoped, tag = 'scoped memory for tpu_custom_call.1']
    #allocation4 [shape = 's32[1]{0}', space=sflag, size = 0x4, scoped, tag = 'scoped memory for tpu_custom_call.1']
    #allocation5 [shape = 'u8[98304]{0}', space=vmem, size = 0x18000, scoped, tag = 'input window, operand 1, single buffered']
    #allocation6 [shape = 's32[1]{0}', space=sflag, size = 0x4, scoped, tag = 'scoped memory for tpu_custom_call.1']
    #allocation7 [shape = 'u8[131072]{0}', space=vmem, size = 0x20000, scoped, tag = 'input window, operand 3, single buffered']
    #allocation8 [shape = 'u8[8192]{0}', space=vmem, size = 0x2000, scoped, tag = 'output window, operand 0, single buffered']
    %10 = vsyncpa [#allocation3], 0
    %11 = vsyncpa [#allocation6], 0
    %12 = vsyncpa [#allocation4], 0
    // Predicated region
    $region2: #{tpu_custom_call.1} parent=1 // pred_check
      _
    $region3: #{tpu_custom_call.1} parent=1 // pred_check_branch
      %14 = sbr.rel (0) target = $region5
    $region4: #{tpu_custom_call.1} parent=1 // pred_region
      %s16 = ssub.s32 128, 128
      %17 = vsyncadd [#allocation3], %s16
      %s18 = sshll.u32 [#allocation2], 4
      %s19 = int_to_ptr.vmem [resolvable:$true] %s18
      %24 = dma.hbm_to_vmem [thread:$0]  %s0, 128, %s19, [#allocation3], 64, 64, 4
    $region5: #{tpu_custom_call.1} parent=1 // pred_fallthru
      _
    // Predicated region
    $region6: #{tpu_custom_call.1} parent=1 // pred_check
      _
    $region7: #{tpu_custom_call.1} parent=1 // pred_check_branch
      %26 = sbr.rel (0) target = $region9
    $region8: #{tpu_custom_call.1} parent=1 // pred_region
      %s28 = ssub.s32 3072, 3072
      %29 = vsyncadd [#allocation6], %s28
      %s30 = sshll.u32 [#allocation5], 4
      %s31 = int_to_ptr.vmem [resolvable:$true] %s30
      %36 = dma.hbm_to_vmem [thread:$0]  %s1, 3072, %s31, [#allocation6], 192, 192, 12
    $region9: #{tpu_custom_call.1} parent=1 // pred_fallthru
      _
    // Predicated region
    $region10: #{tpu_custom_call.1} parent=1 // pred_check
      _
    $region11: #{tpu_custom_call.1} parent=1 // pred_check_branch
      %38 = sbr.rel (0) target = $region13
    $region12: #{tpu_custom_call.1} parent=1 // pred_region
      _
    $region13: #{tpu_custom_call.1} parent=1 // pred_fallthru
      _
    // Predicated region
    $region14: #{tpu_custom_call.1} parent=1 // pred_check
      _
    $region15: #{tpu_custom_call.1} parent=1 // pred_check_branch
      %40 = sbr.rel (0) target = $region17
    $region16: #{tpu_custom_call.1} parent=1 // pred_region
      %s42 = ssub.s32 4096, 4096
      %43 = vsyncadd [#allocation6], %s42
      %s44 = sshll.u32 [#allocation7], 4
      %s45 = int_to_ptr.vmem [resolvable:$true] %s44
      %50 = dma.hbm_to_vmem [thread:$0]  %s3, 4096, %s45, [#allocation6], 256, 256, 16
    $region17: #{tpu_custom_call.1} parent=1 // pred_fallthru
      _
    // Predicated region
    $region18: #{tpu_custom_call.1} parent=1 // pred_check
      _
    $region19: #{tpu_custom_call.1} parent=1 // pred_check_branch
      %52 = sbr.rel (0) target = $region21
    $region20: #{tpu_custom_call.1} parent=1 // pred_region
      _
    $region21: #{tpu_custom_call.1} parent=1 // pred_fallthru
      _
    // Predicated region
    $region22: #{tpu_custom_call.1} parent=1 // pred_check
      _
    $region23: #{tpu_custom_call.1} parent=1 // pred_check_branch
      %54 = sbr.rel (0) target = $region25
    $region24: #{tpu_custom_call.1} parent=1 // pred_region
      %55 = dma.done [#allocation3], 128
    $region25: #{tpu_custom_call.1} parent=1 // pred_fallthru
      _
    // Predicated region
    $region26: #{tpu_custom_call.1} parent=1 // pred_check
      _
    $region27: #{tpu_custom_call.1} parent=1 // pred_check_branch
      %57 = sbr.rel (0) target = $region29
    $region28: #{tpu_custom_call.1} parent=1 // pred_region
      %58 = dma.done [#allocation6], 3072
    $region29: #{tpu_custom_call.1} parent=1 // pred_fallthru
      _
    // Predicated region
    $region30: #{tpu_custom_call.1} parent=1 // pred_check
      _
    $region31: #{tpu_custom_call.1} parent=1 // pred_check_branch
      %60 = sbr.rel (0) target = $region33
    $region32: #{tpu_custom_call.1} parent=1 // pred_region
      %61 = dma.done [#allocation6], 4096
    $region33: #{tpu_custom_call.1} parent=1 // pred_fallthru
      _
    %v63 = vld [vmem:[#allocation2] sm:$0xf]
    %v64 = vld [vmem:[#allocation2 + $0x4] sm:$0xf]
    %v65 = vld [vmem:[#allocation5] sm:$0xff]
    %v66 = vld [vmem:[#allocation5 + $0x8] sm:$0xf]
    %v67 = vld [vmem:[#allocation5 + $0xc] sm:$0xff]
    %v68 = vld [vmem:[#allocation5 + $0x14] sm:$0xf]
    %v69 = vld [vmem:[#allocation5 + $0x18] sm:$0xff]
    %v70 = vld [vmem:[#allocation5 + $0x20] sm:$0xf]
    %v71 = vld [vmem:[#allocation5 + $0x24] sm:$0xff]
    %v72 = vld [vmem:[#allocation5 + $0x2c] sm:$0xf]
    %v73 = vld [vmem:[#allocation5 + $0x30] sm:$0xff]
    %v74 = vld [vmem:[#allocation5 + $0x38] sm:$0xf]
    %v75 = vld [vmem:[#allocation5 + $0x3c] sm:$0xff]
    %v76 = vld [vmem:[#allocation5 + $0x44] sm:$0xf]
    %v77 = vld [vmem:[#allocation5 + $0x48] sm:$0xff]
    %v78 = vld [vmem:[#allocation5 + $0x50] sm:$0xf]
    %v79 = vld [vmem:[#allocation5 + $0x54] sm:$0xff]
    %v80 = vld [vmem:[#allocation5 + $0x5c] sm:$0xf]
    %v81 = vld [vmem:[#allocation5 + $0x60] sm:$0xff]
    %v82 = vld [vmem:[#allocation5 + $0x68] sm:$0xf]
    %v83 = vld [vmem:[#allocation5 + $0x6c] sm:$0xff]
    %v84 = vld [vmem:[#allocation5 + $0x74] sm:$0xf]
    %v85 = vld [vmem:[#allocation5 + $0x78] sm:$0xff]
    %v86 = vld [vmem:[#allocation5 + $0x80] sm:$0xf]
    %v87 = vld [vmem:[#allocation5 + $0x84] sm:$0xff]
    %v88 = vld [vmem:[#allocation5 + $0x8c] sm:$0xf]
    %v89 = vld [vmem:[#allocation5 + $0x90] sm:$0xff]
    %v90 = vld [vmem:[#allocation5 + $0x98] sm:$0xf]
    %v91 = vld [vmem:[#allocation5 + $0x9c] sm:$0xff]
    %v92 = vld [vmem:[#allocation5 + $0xa4] sm:$0xf]
    %v93 = vld [vmem:[#allocation5 + $0xa8] sm:$0xff]
    %v94 = vld [vmem:[#allocation5 + $0xb0] sm:$0xf]
    %v95 = vld [vmem:[#allocation5 + $0xb4] sm:$0xff]
    %v96 = vld [vmem:[#allocation5 + $0xbc] sm:$0xf]
    %v97 = vld [vmem:[%s2] sm:$0x7]
    %v99 = vlaneseq
    %v100 = vshrl.u32 %v99, 7
    %v101 = vsub.s32 0, %v100
    %v102 = vrot.slane %v97, %v101
    %v103 = vlaneseq
    %v104 = vshrl.u32 %v103, 7
    %v105 = vsub.s32 1, %v104
    %v106 = vrot.slane %v97, %v105
    %v107 = vlaneseq
    %v108 = vshrl.u32 %v107, 7
    %v109 = vsub.s32 2, %v108
    %v110 = vrot.slane %v97, %v109
    %v116 = vunpack.c.l.b16 %v63
    %v117 = vunpack.c.l.b16 %v64
    %v118 = vpack.c.b16 %v117, %v116
    %v152 = vunpack.c.l.b16 %v65
    %v153 = vunpack.c.h.b16 %v65
    %v154 = vunpack.c.l.b16 %v66
    %v155 = vunpack.c.l.b16 %v67
    %v156 = vunpack.c.h.b16 %v67
    %v157 = vunpack.c.l.b16 %v68
    %v158 = vunpack.c.l.b16 %v69
    %v159 = vunpack.c.h.b16 %v69
    %v160 = vunpack.c.l.b16 %v70
    %v161 = vunpack.c.l.b16 %v71
    %v162 = vunpack.c.h.b16 %v71
    %v163 = vunpack.c.l.b16 %v72
    %v164 = vunpack.c.l.b16 %v73
    %v165 = vunpack.c.h.b16 %v73
    %v166 = vunpack.c.l.b16 %v74
    %v167 = vunpack.c.l.b16 %v75
    %v168 = vunpack.c.h.b16 %v75
    %v169 = vunpack.c.l.b16 %v76
    %v170 = vunpack.c.l.b16 %v77
    %v171 = vunpack.c.h.b16 %v77
    %v172 = vunpack.c.l.b16 %v78
    %v173 = vunpack.c.l.b16 %v79
    %v174 = vunpack.c.h.b16 %v79
    %v175 = vunpack.c.l.b16 %v80
    %v176 = vunpack.c.l.b16 %v81
    %v177 = vunpack.c.h.b16 %v81
    %v178 = vunpack.c.l.b16 %v82
    %v179 = vunpack.c.l.b16 %v83
    %v180 = vunpack.c.h.b16 %v83
    %v181 = vunpack.c.l.b16 %v84
    %v182 = vunpack.c.l.b16 %v85
    %v183 = vunpack.c.h.b16 %v85
    %v184 = vunpack.c.l.b16 %v86
    %v185 = vunpack.c.l.b16 %v87
    %v186 = vunpack.c.h.b16 %v87
    %v187 = vunpack.c.l.b16 %v88
    %v188 = vunpack.c.l.b16 %v89
    %v189 = vunpack.c.h.b16 %v89
    %v190 = vunpack.c.l.b16 %v90
    %v191 = vunpack.c.l.b16 %v91
    %v192 = vunpack.c.h.b16 %v91
    %v193 = vunpack.c.l.b16 %v92
    %v194 = vunpack.c.l.b16 %v93
    %v195 = vunpack.c.h.b16 %v93
    %v196 = vunpack.c.l.b16 %v94
    %v197 = vunpack.c.l.b16 %v95
    %v198 = vunpack.c.h.b16 %v95
    %v199 = vunpack.c.l.b16 %v96
    %v200 = vpack.c.b16 %v155, %v152
    %v201 = vpack.c.b16 %v156, %v153
    %v202 = vpack.c.b16 %v157, %v154
    %v203 = vpack.c.b16 %v161, %v158
    %v204 = vpack.c.b16 %v162, %v159
    %v205 = vpack.c.b16 %v163, %v160
    %v206 = vpack.c.b16 %v167, %v164
    %v207 = vpack.c.b16 %v168, %v165
    %v208 = vpack.c.b16 %v169, %v166
    %v209 = vpack.c.b16 %v173, %v170
    %v210 = vpack.c.b16 %v174, %v171
    %v211 = vpack.c.b16 %v175, %v172
    %v212 = vpack.c.b16 %v179, %v176
    %v213 = vpack.c.b16 %v180, %v177
    %v214 = vpack.c.b16 %v181, %v178
    %v215 = vpack.c.b16 %v185, %v182
    %v216 = vpack.c.b16 %v186, %v183
    %v217 = vpack.c.b16 %v187, %v184
    %v218 = vpack.c.b16 %v191, %v188
    %v219 = vpack.c.b16 %v192, %v189
    %v220 = vpack.c.b16 %v193, %v190
    %v221 = vpack.c.b16 %v197, %v194
    %v222 = vpack.c.b16 %v198, %v195
    %v223 = vpack.c.b16 %v199, %v196
    %248 = vmatprep.subr.bf16.mxu0 %v201
    %249 = vmatpush1.bf16.msra.mxu0 %v200
    %250 = vmatprep.subr.bf16.mxu0 %v204
    %251 = vmatpush1.bf16.msra.mxu0 %v203
    %252 = vmatprep.subr.bf16.mxu0 %v207
    %253 = vmatpush1.bf16.msra.mxu0 %v206
    %254 = vmatprep.subr.bf16.mxu0 %v210
    %255 = vmatpush1.bf16.msra.mxu0 %v209
    %256 = vmatprep.subr.bf16.mxu0 %v213
    %257 = vmatpush1.bf16.msra.mxu0 %v212
    %258 = vmatprep.subr.bf16.mxu0 %v216
    %259 = vmatpush1.bf16.msra.mxu0 %v215
    %260 = vmatprep.subr.bf16.mxu0 %v219
    %261 = vmatpush1.bf16.msra.mxu0 %v218
    %262 = vmatprep.subr.bf16.mxu0 %v222
    %263 = vmatpush1.bf16.msra.mxu0 %v221
    %264 = vmatprep.subr.bf16.mxu0 0
    %265 = vmatpush1.bf16.msra.mxu0 0
    %266 = vmatprep.subr.bf16.mxu0 0
    %267 = vmatpush1.bf16.msra.mxu0 0
    %268 = vmatprep.subr.bf16.mxu0 0
    %269 = vmatpush1.bf16.msra.mxu0 0
    %270 = vmatprep.subr.bf16.mxu0 0
    %271 = vmatpush1.bf16.msra.mxu0 0
    %272 = vmatprep.subr.bf16.mxu0 0
    %273 = vmatpush1.bf16.msra.mxu0 0
    %274 = vmatprep.subr.bf16.mxu0 0
    %275 = vmatpush1.bf16.msra.mxu0 0
    %276 = vmatprep.subr.bf16.mxu0 0
    %277 = vmatpush1.bf16.msra.mxu0 0
    %278 = vmatprep.subr.bf16.mxu0 0
    %279 = vmatpush1.bf16.msra.mxu0 0
    %280 = vmatprep.mubr.bf16.mxu0 0
    %281 = vmatmul.mubr.bf16.gmra.mrb[0].mxu0 %v118
    %v282 = vpop.f32.mrb[0].mxu0
    %v283 = vadd.f32 %v102, %v282
    %v284 = vpop.f32.mrb[0].mxu0
    %v285 = vadd.f32 %v106, %v284
    %v286 = vpop.f32.mrb[0].mxu0
    %v287 = vadd.f32 %v102, %v286
    %v288 = vpop.f32.mrb[0].mxu0
    %v289 = vadd.f32 %v106, %v288
    %290 = vdwg.mxu0
    %291 = vmatprep.subr.bf16.mxu0 0
    %292 = vmatpush1.bf16.msra.mxu0 %v202
    %293 = vmatprep.subr.bf16.mxu0 0
    %294 = vmatpush1.bf16.msra.mxu0 %v205
    %295 = vmatprep.subr.bf16.mxu0 0
    %296 = vmatpush1.bf16.msra.mxu0 %v208
    %297 = vmatprep.subr.bf16.mxu0 0
    %298 = vmatpush1.bf16.msra.mxu0 %v211
    %299 = vmatprep.subr.bf16.mxu0 0
    %300 = vmatpush1.bf16.msra.mxu0 %v214
    %301 = vmatprep.subr.bf16.mxu0 0
    %302 = vmatpush1.bf16.msra.mxu0 %v217
    %303 = vmatprep.subr.bf16.mxu0 0
    %304 = vmatpush1.bf16.msra.mxu0 %v220
    %305 = vmatprep.subr.bf16.mxu0 0
    %306 = vmatpush1.bf16.msra.mxu0 %v223
    %307 = vmatprep.subr.bf16.mxu0 0
    %308 = vmatpush1.bf16.msra.mxu0 0
    %309 = vmatprep.subr.bf16.mxu0 0
    %310 = vmatpush1.bf16.msra.mxu0 0
    %311 = vmatprep.subr.bf16.mxu0 0
    %312 = vmatpush1.bf16.msra.mxu0 0
    %313 = vmatprep.subr.bf16.mxu0 0
    %314 = vmatpush1.bf16.msra.mxu0 0
    %315 = vmatprep.subr.bf16.mxu0 0
    %316 = vmatpush1.bf16.msra.mxu0 0
    %317 = vmatprep.subr.bf16.mxu0 0
    %318 = vmatpush1.bf16.msra.mxu0 0
    %319 = vmatprep.subr.bf16.mxu0 0
    %320 = vmatpush1.bf16.msra.mxu0 0
    %321 = vmatprep.subr.bf16.mxu0 0
    %322 = vmatpush1.bf16.msra.mxu0 0
    %323 = vmatprep.mubr.bf16.mxu0 0
    %324 = vmatmul.mubr.bf16.gmra.mrb[0].mxu0 %v118
    %v325 = vpop.f32.mrb[0].mxu0
    %v326 = vadd.f32 %v110, %v325
    %v327 = vpop.f32.mrb[0].mxu0
    %v328 = vpop.f32.mrb[0].mxu0
    %v329 = vadd.f32 %v110, %v328
    %v330 = vpop.f32.mrb[0].mxu0
    %331 = vdwg.mxu0
    %vm332 = vcmask 15360
    %v333 = vsel %vm332, %v326, -inf
    %334 = vmax.xlane.f32.xlu0 %v333
    %v335 = vpop.xlane.xlu0 %334
    %v336 = vsel %vm332, %v329, -inf
    %337 = vmax.xlane.f32.xlu0 %v336
    %v338 = vpop.xlane.xlu0 %337
    %v339 = vsub.f32 %v326, %v335
    %v340 = vsub.f32 %v329, %v338
    %v341 = vmul.f32 %v339, 1.442695
    %v342 = vpow.pop %v341
    %v343 = vmul.f32 %v340, 1.442695
    %v344 = vpow.pop %v343
    %v345 = vsel %vm332, %v342, 0.0
    %346 = vadd.xlane.f32.xlu0 %v345
    %v347 = vpop.xlane.xlu0 %346
    %v348 = vsel %vm332, %v344, 0.0
    %349 = vadd.xlane.f32.xlu0 %v348
    %v350 = vpop.xlane.xlu0 %349
    %v351 = vrcp.pop %v347
    %v352 = vrcp.pop %v350
    %v353 = vmul.f32 %v342, %v351
    %v354 = vmul.f32 %v344, %v352
    %356 = vset.pattern.permute.xlu0 0
    %357 = vperm.xlu0 %356, %v353
    %v358 = vpop.permute.xlu0 %357
    %361 = vset.pattern.permute.xlu0 0
    %362 = vperm.xlu0 %361, %v354
    %v363 = vpop.permute.xlu0 %362
    %v365 = vmul.f32 %v283, %v358
    %v366 = vmul.f32 %v287, %v363
    %367 = vset.pattern.permute.xlu0 1
    %368 = vperm.xlu0 %367, %v353
    %v369 = vpop.permute.xlu0 %368
    %371 = vset.pattern.permute.xlu0 1
    %372 = vperm.xlu0 %371, %v354
    %v373 = vpop.permute.xlu0 %372
    %v375 = vmul.f32 %v285, %v369
    %v376 = vmul.f32 %v289, %v373
    %v377 = vadd.f32 %v365, %v375
    %v378 = vadd.f32 %v366, %v376
    %v379 = vpack.c.bf16 %v378, %v377
    %v380 = vld [vmem:[#allocation7] sm:$0xff]
    %v381 = vld [vmem:[#allocation7 + $0x8] sm:$0xff]
    %v382 = vld [vmem:[#allocation7 + $0x10] sm:$0xff]
    %v383 = vld [vmem:[#allocation7 + $0x18] sm:$0xff]
    %v384 = vld [vmem:[#allocation7 + $0x20] sm:$0xff]
    %v385 = vld [vmem:[#allocation7 + $0x28] sm:$0xff]
    %v386 = vld [vmem:[#allocation7 + $0x30] sm:$0xff]
    %v387 = vld [vmem:[#allocation7 + $0x38] sm:$0xff]
    %v388 = vld [vmem:[#allocation7 + $0x40] sm:$0xff]
    %v389 = vld [vmem:[#allocation7 + $0x48] sm:$0xff]
    %v390 = vld [vmem:[#allocation7 + $0x50] sm:$0xff]
    %v391 = vld [vmem:[#allocation7 + $0x58] sm:$0xff]
    %v392 = vld [vmem:[#allocation7 + $0x60] sm:$0xff]
    %v393 = vld [vmem:[#allocation7 + $0x68] sm:$0xff]
    %v394 = vld [vmem:[#allocation7 + $0x70] sm:$0xff]
    %v395 = vld [vmem:[#allocation7 + $0x78] sm:$0xff]
    %v396 = vld [vmem:[#allocation7 + $0x80] sm:$0xff]
    %v397 = vld [vmem:[#allocation7 + $0x88] sm:$0xff]
    %v398 = vld [vmem:[#allocation7 + $0x90] sm:$0xff]
    %v399 = vld [vmem:[#allocation7 + $0x98] sm:$0xff]
    %v400 = vld [vmem:[#allocation7 + $0xa0] sm:$0xff]
    %v401 = vld [vmem:[#allocation7 + $0xa8] sm:$0xff]
    %v402 = vld [vmem:[#allocation7 + $0xb0] sm:$0xff]
    %v403 = vld [vmem:[#allocation7 + $0xb8] sm:$0xff]
    %v404 = vld [vmem:[#allocation7 + $0xc0] sm:$0xff]
    %v405 = vld [vmem:[#allocation7 + $0xc8] sm:$0xff]
    %v406 = vld [vmem:[#allocation7 + $0xd0] sm:$0xff]
    %v407 = vld [vmem:[#allocation7 + $0xd8] sm:$0xff]
    %v408 = vld [vmem:[#allocation7 + $0xe0] sm:$0xff]
    %v409 = vld [vmem:[#allocation7 + $0xe8] sm:$0xff]
    %v410 = vld [vmem:[#allocation7 + $0xf0] sm:$0xff]
    %v411 = vld [vmem:[#allocation7 + $0xf8] sm:$0xff]
    %v412 = vld [vmem:[%s4] sm:$0xf]
    %v414 = vlaneseq
    %v415 = vshrl.u32 %v414, 7
    %v416 = vsub.s32 0, %v415
    %v417 = vrot.slane %v412, %v416
    %v418 = vlaneseq
    %v419 = vshrl.u32 %v418, 7
    %v420 = vsub.s32 1, %v419
    %v421 = vrot.slane %v412, %v420
    %v422 = vlaneseq
    %v423 = vshrl.u32 %v422, 7
    %v424 = vsub.s32 2, %v423
    %v425 = vrot.slane %v412, %v424
    %v426 = vlaneseq
    %v427 = vshrl.u32 %v426, 7
    %v428 = vsub.s32 3, %v427
    %v429 = vrot.slane %v412, %v428
    %v466 = vunpack.c.l.b16 %v380
    %v467 = vunpack.c.h.b16 %v380
    %v468 = vunpack.c.l.b16 %v381
    %v469 = vunpack.c.h.b16 %v381
    %v470 = vunpack.c.l.b16 %v382
    %v471 = vunpack.c.h.b16 %v382
    %v472 = vunpack.c.l.b16 %v383
    %v473 = vunpack.c.h.b16 %v383
    %v474 = vunpack.c.l.b16 %v384
    %v475 = vunpack.c.h.b16 %v384
    %v476 = vunpack.c.l.b16 %v385
    %v477 = vunpack.c.h.b16 %v385
    %v478 = vunpack.c.l.b16 %v386
    %v479 = vunpack.c.h.b16 %v386
    %v480 = vunpack.c.l.b16 %v387
    %v481 = vunpack.c.h.b16 %v387
    %v482 = vunpack.c.l.b16 %v388
    %v483 = vunpack.c.h.b16 %v388
    %v484 = vunpack.c.l.b16 %v389
    %v485 = vunpack.c.h.b16 %v389
    %v486 = vunpack.c.l.b16 %v390
    %v487 = vunpack.c.h.b16 %v390
    %v488 = vunpack.c.l.b16 %v391
    %v489 = vunpack.c.h.b16 %v391
    %v490 = vunpack.c.l.b16 %v392
    %v491 = vunpack.c.h.b16 %v392
    %v492 = vunpack.c.l.b16 %v393
    %v493 = vunpack.c.h.b16 %v393
    %v494 = vunpack.c.l.b16 %v394
    %v495 = vunpack.c.h.b16 %v394
    %v496 = vunpack.c.l.b16 %v395
    %v497 = vunpack.c.h.b16 %v395
    %v498 = vunpack.c.l.b16 %v396
    %v499 = vunpack.c.h.b16 %v396
    %v500 = vunpack.c.l.b16 %v397
    %v501 = vunpack.c.h.b16 %v397
    %v502 = vunpack.c.l.b16 %v398
    %v503 = vunpack.c.h.b16 %v398
    %v504 = vunpack.c.l.b16 %v399
    %v505 = vunpack.c.h.b16 %v399
    %v506 = vunpack.c.l.b16 %v400
    %v507 = vunpack.c.h.b16 %v400
    %v508 = vunpack.c.l.b16 %v401
    %v509 = vunpack.c.h.b16 %v401
    %v510 = vunpack.c.l.b16 %v402
    %v511 = vunpack.c.h.b16 %v402
    %v512 = vunpack.c.l.b16 %v403
    %v513 = vunpack.c.h.b16 %v403
    %v514 = vunpack.c.l.b16 %v404
    %v515 = vunpack.c.h.b16 %v404
    %v516 = vunpack.c.l.b16 %v405
    %v517 = vunpack.c.h.b16 %v405
    %v518 = vunpack.c.l.b16 %v406
    %v519 = vunpack.c.h.b16 %v406
    %v520 = vunpack.c.l.b16 %v407
    %v521 = vunpack.c.h.b16 %v407
    %v522 = vunpack.c.l.b16 %v408
    %v523 = vunpack.c.h.b16 %v408
    %v524 = vunpack.c.l.b16 %v409
    %v525 = vunpack.c.h.b16 %v409
    %v526 = vunpack.c.l.b16 %v410
    %v527 = vunpack.c.h.b16 %v410
    %v528 = vunpack.c.l.b16 %v411
    %v529 = vunpack.c.h.b16 %v411
    %v530 = vpack.c.b16 %v470, %v466
    %v531 = vpack.c.b16 %v471, %v467
    %v532 = vpack.c.b16 %v472, %v468
    %v533 = vpack.c.b16 %v473, %v469
    %v534 = vpack.c.b16 %v478, %v474
    %v535 = vpack.c.b16 %v479, %v475
    %v536 = vpack.c.b16 %v480, %v476
    %v537 = vpack.c.b16 %v481, %v477
    %v538 = vpack.c.b16 %v486, %v482
    %v539 = vpack.c.b16 %v487, %v483
    %v540 = vpack.c.b16 %v488, %v484
    %v541 = vpack.c.b16 %v489, %v485
    %v542 = vpack.c.b16 %v494, %v490
    %v543 = vpack.c.b16 %v495, %v491
    %v544 = vpack.c.b16 %v496, %v492
    %v545 = vpack.c.b16 %v497, %v493
    %v546 = vpack.c.b16 %v502, %v498
    %v547 = vpack.c.b16 %v503, %v499
    %v548 = vpack.c.b16 %v504, %v500
    %v549 = vpack.c.b16 %v505, %v501
    %v550 = vpack.c.b16 %v510, %v506
    %v551 = vpack.c.b16 %v511, %v507
    %v552 = vpack.c.b16 %v512, %v508
    %v553 = vpack.c.b16 %v513, %v509
    %v554 = vpack.c.b16 %v518, %v514
    %v555 = vpack.c.b16 %v519, %v515
    %v556 = vpack.c.b16 %v520, %v516
    %v557 = vpack.c.b16 %v521, %v517
    %v558 = vpack.c.b16 %v526, %v522
    %v559 = vpack.c.b16 %v527, %v523
    %v560 = vpack.c.b16 %v528, %v524
    %v561 = vpack.c.b16 %v529, %v525
    %594 = vmatprep.subr.bf16.mxu0 %v531
    %595 = vmatpush1.bf16.msra.mxu0 %v530
    %596 = vmatprep.subr.bf16.mxu0 %v535
    %597 = vmatpush1.bf16.msra.mxu0 %v534
    %598 = vmatprep.subr.bf16.mxu0 %v539
    %599 = vmatpush1.bf16.msra.mxu0 %v538
    %600 = vmatprep.subr.bf16.mxu0 %v543
    %601 = vmatpush1.bf16.msra.mxu0 %v542
    %602 = vmatprep.subr.bf16.mxu0 %v547
    %603 = vmatpush1.bf16.msra.mxu0 %v546
    %604 = vmatprep.subr.bf16.mxu0 %v551
    %605 = vmatpush1.bf16.msra.mxu0 %v550
    %606 = vmatprep.subr.bf16.mxu0 %v555
    %607 = vmatpush1.bf16.msra.mxu0 %v554
    %608 = vmatprep.subr.bf16.mxu0 %v559
    %609 = vmatpush1.bf16.msra.mxu0 %v558
    %610 = vmatprep.subr.bf16.mxu0 0
    %611 = vmatpush1.bf16.msra.mxu0 0
    %612 = vmatprep.subr.bf16.mxu0 0
    %613 = vmatpush1.bf16.msra.mxu0 0
    %614 = vmatprep.subr.bf16.mxu0 0
    %615 = vmatpush1.bf16.msra.mxu0 0
    %616 = vmatprep.subr.bf16.mxu0 0
    %617 = vmatpush1.bf16.msra.mxu0 0
    %618 = vmatprep.subr.bf16.mxu0 0
    %619 = vmatpush1.bf16.msra.mxu0 0
    %620 = vmatprep.subr.bf16.mxu0 0
    %621 = vmatpush1.bf16.msra.mxu0 0
    %622 = vmatprep.subr.bf16.mxu0 0
    %623 = vmatpush1.bf16.msra.mxu0 0
    %624 = vmatprep.subr.bf16.mxu0 0
    %625 = vmatpush1.bf16.msra.mxu0 0
    %626 = vmatprep.mubr.bf16.mxu0 0
    %627 = vmatmul.mubr.bf16.gmra.mrb[0].mxu0 %v379
    %v628 = vpop.f32.mrb[0].mxu0
    %v629 = vadd.f32 %v417, %v628
    %v630 = vpop.f32.mrb[0].mxu0
    %v631 = vadd.f32 %v421, %v630
    %v632 = vpop.f32.mrb[0].mxu0
    %v633 = vadd.f32 %v417, %v632
    %v634 = vpop.f32.mrb[0].mxu0
    %v635 = vadd.f32 %v421, %v634
    %636 = vdwg.mxu0
    %637 = vmatprep.subr.bf16.mxu0 %v533
    %638 = vmatpush1.bf16.msra.mxu0 %v532
    %639 = vmatprep.subr.bf16.mxu0 %v537
    %640 = vmatpush1.bf16.msra.mxu0 %v536
    %641 = vmatprep.subr.bf16.mxu0 %v541
    %642 = vmatpush1.bf16.msra.mxu0 %v540
    %643 = vmatprep.subr.bf16.mxu0 %v545
    %644 = vmatpush1.bf16.msra.mxu0 %v544
    %645 = vmatprep.subr.bf16.mxu0 %v549
    %646 = vmatpush1.bf16.msra.mxu0 %v548
    %647 = vmatprep.subr.bf16.mxu0 %v553
    %648 = vmatpush1.bf16.msra.mxu0 %v552
    %649 = vmatprep.subr.bf16.mxu0 %v557
    %650 = vmatpush1.bf16.msra.mxu0 %v556
    %651 = vmatprep.subr.bf16.mxu0 %v561
    %652 = vmatpush1.bf16.msra.mxu0 %v560
    %653 = vmatprep.subr.bf16.mxu0 0
    %654 = vmatpush1.bf16.msra.mxu0 0
    %655 = vmatprep.subr.bf16.mxu0 0
    %656 = vmatpush1.bf16.msra.mxu0 0
    %657 = vmatprep.subr.bf16.mxu0 0
    %658 = vmatpush1.bf16.msra.mxu0 0
    %659 = vmatprep.subr.bf16.mxu0 0
    %660 = vmatpush1.bf16.msra.mxu0 0
    %661 = vmatprep.subr.bf16.mxu0 0
    %662 = vmatpush1.bf16.msra.mxu0 0
    %663 = vmatprep.subr.bf16.mxu0 0
    %664 = vmatpush1.bf16.msra.mxu0 0
    %665 = vmatprep.subr.bf16.mxu0 0
    %666 = vmatpush1.bf16.msra.mxu0 0
    %667 = vmatprep.subr.bf16.mxu0 0
    %668 = vmatpush1.bf16.msra.mxu0 0
    %669 = vmatprep.mubr.bf16.mxu0 0
    %670 = vmatmul.mubr.bf16.gmra.mrb[0].mxu0 %v379
    %v671 = vpop.f32.mrb[0].mxu0
    %v672 = vadd.f32 %v425, %v671
    %v673 = vpop.f32.mrb[0].mxu0
    %v674 = vadd.f32 %v429, %v673
    %v675 = vpop.f32.mrb[0].mxu0
    %v676 = vadd.f32 %v425, %v675
    %v677 = vpop.f32.mrb[0].mxu0
    %v678 = vadd.f32 %v429, %v677
    %679 = vdwg.mxu0
    %vm680 = vcmask 23552
    %v681 = vsel %vm680, %v674, -inf
    %682 = vmax.xlane.f32.xlu0 %v681
    %v683 = vpop.xlane.xlu0 %682
    %v684 = vsel %vm680, %v678, -inf
    %685 = vmax.xlane.f32.xlu0 %v684
    %v686 = vpop.xlane.xlu0 %685
    %v687 = vsub.f32 %v674, %v683
    %v688 = vsub.f32 %v678, %v686
    %v689 = vmul.f32 %v687, 1.442695
    %v690 = vpow.pop %v689
    %v691 = vmul.f32 %v688, 1.442695
    %v692 = vpow.pop %v691
    %v693 = vsel %vm680, %v690, 0.0
    %694 = vadd.xlane.f32.xlu0 %v693
    %v695 = vpop.xlane.xlu0 %694
    %v696 = vsel %vm680, %v692, 0.0
    %697 = vadd.xlane.f32.xlu0 %v696
    %v698 = vpop.xlane.xlu0 %697
    %v699 = vrcp.pop %v695
    %v700 = vrcp.pop %v698
    %v701 = vmul.f32 %v690, %v699
    %v702 = vmul.f32 %v692, %v700
    %704 = vset.pattern.permute.xlu0 0
    %705 = vperm.xlu0 %704, %v701
    %v706 = vpop.permute.xlu0 %705
    %709 = vset.pattern.permute.xlu0 0
    %710 = vperm.xlu0 %709, %v702
    %v711 = vpop.permute.xlu0 %710
    %v713 = vmul.f32 %v629, %v706
    %v714 = vmul.f32 %v633, %v711
    %715 = vset.pattern.permute.xlu0 1
    %716 = vperm.xlu0 %715, %v701
    %v717 = vpop.permute.xlu0 %716
    %719 = vset.pattern.permute.xlu0 1
    %720 = vperm.xlu0 %719, %v702
    %v721 = vpop.permute.xlu0 %720
    %v723 = vmul.f32 %v631, %v717
    %v724 = vmul.f32 %v635, %v721
    %v725 = vadd.f32 %v713, %v723
    %v726 = vadd.f32 %v714, %v724
    %727 = vset.pattern.permute.xlu0 2
    %728 = vperm.xlu0 %727, %v701
    %v729 = vpop.permute.xlu0 %728
    %731 = vset.pattern.permute.xlu0 2
    %732 = vperm.xlu0 %731, %v702
    %v733 = vpop.permute.xlu0 %732
    %v735 = vmul.f32 %v672, %v729
    %v736 = vmul.f32 %v676, %v733
    %v737 = vadd.f32 %v725, %v735
    %v738 = vadd.f32 %v726, %v736
    %739 = vst [vmem:[#allocation8] sm:$0xff] %v737
    %740 = vst [vmem:[#allocation8 + $0x8] sm:$0xff] %v738
    // Predicated region
    $region34: #{tpu_custom_call.1} parent=1 // pred_check
      _
    $region35: #{tpu_custom_call.1} parent=1 // pred_check_branch
      %742 = sbr.rel (0) target = $region37
    $region36: #{tpu_custom_call.1} parent=1 // pred_region
      %s744 = ssub.s32 256, 256
      %745 = vsyncadd [#allocation4], %s744
      %s746 = sshll.u32 [#allocation8], 4
      %s747 = int_to_ptr.vmem [resolvable:$true] %s746
      %752 = dma.vmem_to_hbm [thread:$0]  %s747, 256, %s5, [#allocation4], 128, 128, 8
    $region37: #{tpu_custom_call.1} parent=1 // pred_fallthru
      _
    // Predicated region
    $region38: #{tpu_custom_call.1} parent=1 // pred_check
      _
    $region39: #{tpu_custom_call.1} parent=1 // pred_check_branch
      %754 = sbr.rel (0) target = $region41
    $region40: #{tpu_custom_call.1} parent=1 // pred_region
      %755 = dma.done [#allocation4], 256
    $region41: #{tpu_custom_call.1} parent=1 // pred_fallthru
      _
    %756 = vsyncpa [#allocation3], 1
    %757 = vsyncpa [#allocation6], 1
    %758 = vsyncpa [#allocation4], 1

</llo_original>
